<compile_context>
chip_gen: v6e
topology: v6e:2x2x1
jax: 0.10.0
libtpu: 0.0.40
codegen_flags: <defaults>
</compile_context>

<pallas_src>
import functools

import jax
import jax.numpy as jnp
from jax.experimental import pallas as pl
from jax.experimental.pallas import tpu as pltpu


def _round_up(x, m):
    return ((x + m - 1) // m) * m


def _cdiv(a, b):
    return -(-a // b)


def _physical_vmem_bytes():
    """Best-effort per-generation VMEM capacity (v7x: 64 MiB, v5e/v6e: 128 MiB)."""
    try:
        info = pltpu.get_tpu_info()
        v = int(getattr(info, "vmem_capacity_bytes", 0) or 0)
        if v > 0:
            return v
    except Exception:
        pass
    try:
        kind = jax.devices()[0].device_kind.lower()
    except Exception:
        kind = ""
    if ("v5" in kind) or ("v6" in kind):
        return 128 * 1024 * 1024
    return 64 * 1024 * 1024  # v7x / unknown: be conservative


def _conv_mm_kernel(p_ref, w_ref, b_ref, o_ref):
    # p_ref: (TMp, G*Kp)   row-packed im2col patches for this grid tile
    # w_ref: (G*Kp, G*Ep)  block-diagonal conv weight (resident across grid)
    # b_ref: (1,    G*Ep)  packed bias, float32 (resident)
    # o_ref: (TMp, G*Ep)   lane-dense packed conv output (float32)
    y = jnp.dot(p_ref[...], w_ref[...], preferred_element_type=jnp.float32)
    o_ref[...] = (y + b_ref[...]).astype(o_ref.dtype)


def conv_layer_pallas(x, weight, bias, *, stride, padding,
                      compute_dtype=jnp.bfloat16):
    """Conv2d forward (NCHW in, NCHW out), matching nn.Conv2d(in, out, k, s, p).

    x:      (B, C, H, W) float32
    weight: (E, C, kh, kw) float32
    bias:   (E,) float32
    compute_dtype: MXU operand dtype (default bf16; accumulation stays f32).
    """
    B, C, H, W = x.shape
    E, Cw, kh, kw = weight.shape
    assert Cw == C, (Cw, C)
    sh = sw = int(stride)
    ph = pw = int(padding)
    Ho = (H + 2 * ph - kh) // sh + 1
    Wo = (W + 2 * pw - kw) // sw + 1
    M = B * Ho * Wo
    K = C * kh * kw

    dt = jnp.dtype(compute_dtype if compute_dtype is not None else x.dtype)
    itemsize = dt.itemsize
    sub = 16 if itemsize < 4 else 8          # sublane multiple for the operand dtype

    # Lane-dense packing: pack G output pixels into one 128-lane output row.
    if E <= 128 and 128 % E == 0:
        G, Ep = 128 // E, E
    else:
        G, Ep = 1, _round_up(E, 128)         # pad channels to a lane multiple instead
    EL = G * Ep
    Kp = _round_up(K, sub)

    # ---- patch extraction (transpose-light im2col; fused by XLA) ------------
    xph = jnp.transpose(jnp.pad(x, ((0, 0), (0, 0), (ph, ph), (pw, pw))),
                        (0, 2, 3, 1))                        # NHWC once (small)
    cols = [xph[:, i:i + (Ho - 1) * sh + 1:sh, j:j + (Wo - 1) * sw + 1:sw, :]
            for i in range(kh) for j in range(kw)]
    patches = jnp.concatenate(cols, axis=-1).reshape(M, K)   # cols = (kh,kw,C), C minor

    # Conv weight as (K, Ep) matmul RHS with matching (kh, kw, C) row order.
    wmat = jnp.transpose(weight, (2, 3, 1, 0)).reshape(K, E)
    wmat_p = jnp.pad(wmat, ((0, Kp - K), (0, Ep - E))).astype(dt)
    bias_p = jnp.pad(bias.astype(jnp.float32), (0, Ep - E))

    # ---- tile sizing from a per-generation VMEM budget -----------------------
    vmem_phys = _physical_vmem_bytes()
    budget = int(vmem_phys * 0.4)                         # double-buffered working set
    weight_bytes = G * Kp * EL * itemsize + EL * 4
    per_row = 2 * (G * Kp * itemsize + EL * 4)            # dbl-buffered patch + f32 out row
    avail = budget - 2 * weight_bytes
    tm_pk_cap = avail // per_row if avail > 0 else 16
    tm_pk_cap = max(16, min(4096, (tm_pk_cap // 16) * 16))

    n_pk = _cdiv(M, G)                                    # packed rows actually needed
    ntiles = max(2, _cdiv(n_pk, tm_pk_cap))               # >=2 so both v7x TCs get work
    if ntiles % 2:
        ntiles += 1                                       # even grid for megacore split
    tm_pk = _round_up(_cdiv(n_pk, ntiles), 16)
    n_pk_pad = ntiles * tm_pk
    Mp = n_pk_pad * G

    patches_p = jnp.pad(patches, ((0, Mp - M), (0, Kp - K))).astype(dt)
    patches_pk = patches_p.reshape(n_pk_pad, G * Kp)      # row-packed LHS

    # Block-diagonal weight kron(I_G, W) via broadcast+reshape (no dense kron op).
    eye = jnp.eye(G, dtype=dt)
    w_big = (eye[:, None, :, None] * wmat_p[None, :, None, :]).reshape(G * Kp, EL)
    b_big = jnp.tile(bias_p, G).reshape(1, EL)

    working_set = tm_pk * per_row + 2 * weight_bytes
    vmem_limit = min(int(vmem_phys * 0.75),
                     max(32 * 1024 * 1024, working_set + (8 << 20)))

    out = pl.pallas_call(
        _conv_mm_kernel,
        out_shape=jax.ShapeDtypeStruct((n_pk_pad, EL), jnp.float32),
        grid=(ntiles,),
        in_specs=[
            pl.BlockSpec((tm_pk, G * Kp), lambda i: (i, 0)),   # patches: tiled over rows
            pl.BlockSpec((G * Kp, EL), lambda i: (0, 0)),      # weight: resident
            pl.BlockSpec((1, EL), lambda i: (0, 0)),           # bias: resident
        ],
        out_specs=pl.BlockSpec((tm_pk, EL), lambda i: (i, 0)),
        compiler_params=pltpu.CompilerParams(
            dimension_semantics=("parallel",),
            vmem_limit_bytes=int(vmem_limit),
        ),
        cost_estimate=pl.CostEstimate(
            flops=2 * M * K * E,                               # logical, not G-inflated
            transcendentals=0,
            bytes_accessed=(n_pk_pad * G * Kp * itemsize       # patches read
                            + G * Kp * EL * itemsize + EL * 4  # weight + bias
                            + n_pk_pad * EL * 4),              # output write
        ),
    )(patches_pk, w_big, b_big)

    # Undo packing (free contiguous reshape), drop padding, back to NCHW.
    y = out.reshape(Mp, Ep)[:M, :E]
    # TODO(synk): emit NHWC directly if the surrounding model accepts it.
    y = y.reshape(B, Ho, Wo, E).transpose(0, 3, 1, 2)
    return y


def _reference(x, weight, bias, *, stride, padding):
    """Plain-JAX reference: lax conv + bias (== nn.Conv2d forward)."""
    y = jax.lax.conv_general_dilated(
        x, weight, window_strides=(stride, stride),
        padding=((padding, padding), (padding, padding)),
        dimension_numbers=("NCHW", "OIHW", "NCHW"))
    return y + bias[None, :, None, None]


if __name__ == "__main__":
    key = jax.random.PRNGKey(0)
    kx, kw1, kw2, kb = jax.random.split(key, 4)

    # Small shapes consistent with the module usage.
    B, C, H, W = 2, 4, 16, 16
    E = 32

    x = jax.random.normal(kx, (B, C, H, W), dtype=jnp.float32)
    bias = 0.1 * jax.random.normal(kb, (E,), dtype=jnp.float32)
    w3 = 0.1 * jax.random.normal(kw1, (E, C, 3, 3), dtype=jnp.float32)
    w7 = 0.05 * jax.random.normal(kw2, (E, C, 7, 7), dtype=jnp.float32)

    # Config 1: ConvLayer(4, 32, kernel_size=3, stride=1, padding=1)
    f1_bf16 = jax.jit(functools.partial(conv_layer_pallas, stride=1, padding=1))
    f1_f32 = jax.jit(functools.partial(conv_layer_pallas, stride=1, padding=1,
                                       compute_dtype=jnp.float32))
    y1 = jax.block_until_ready(f1_bf16(x, w3, bias))
    y1f = jax.block_until_ready(f1_f32(x, w3, bias))
    y1_ref = _reference(x, w3, bias, stride=1, padding=1)
    assert y1.shape == y1_ref.shape, (y1.shape, y1_ref.shape)
    assert jnp.allclose(y1f, y1_ref, atol=5e-4, rtol=5e-4), \
        float(jnp.max(jnp.abs(y1f - y1_ref)))
    assert jnp.allclose(y1, y1_ref, atol=2e-2, rtol=2e-2), \
        float(jnp.max(jnp.abs(y1 - y1_ref)))

    # Config 2: stem-style ConvLayer(4, 32, kernel_size=7, stride=4, padding=3)
    f2_bf16 = jax.jit(functools.partial(conv_layer_pallas, stride=4, padding=3))
    f2_f32 = jax.jit(functools.partial(conv_layer_pallas, stride=4, padding=3,
                                       compute_dtype=jnp.float32))
    y2 = jax.block_until_ready(f2_bf16(x, w7, bias))
    y2f = jax.block_until_ready(f2_f32(x, w7, bias))
    y2_ref = _reference(x, w7, bias, stride=4, padding=3)
    assert y2.shape == y2_ref.shape, (y2.shape, y2_ref.shape)
    assert jnp.allclose(y2f, y2_ref, atol=5e-4, rtol=5e-4), \
        float(jnp.max(jnp.abs(y2f - y2_ref)))
    assert jnp.allclose(y2, y2_ref, atol=2e-2, rtol=2e-2), \
        float(jnp.max(jnp.abs(y2 - y2_ref)))

    print("KERNEL_OK")
</pallas_src>

<mosaic_0001>
module attributes {stable_mosaic.version = 11 : i64} {
  func.func @_conv_mm_kernel(%arg0: i32, %arg1: memref<64x192xbf16, #tpu.memory_space<vmem>>, %arg2: memref<192x128xbf16, #tpu.memory_space<vmem>>, %arg3: memref<1x128xf32, #tpu.memory_space<vmem>>, %arg4: memref<64x128xf32, #tpu.memory_space<vmem>>) attributes {dimension_semantics = [#tpu.dimension_semantics<parallel>], iteration_bounds = array<i64: 2>, scalar_prefetch = 0 : i64, scratch_operands = 0 : i64, tpu.core_type = #tpu.core_type<tc>, window_params = [{transform_indices = @transform_0, window_bounds = array<i64: 64, 192>}, {pipeline_mode = #tpu.pipeline_mode<synchronous>, transform_indices = @transform_1, window_bounds = array<i64: 192, 128>}, {pipeline_mode = #tpu.pipeline_mode<synchronous>, transform_indices = @transform_2, window_bounds = array<i64: 1, 128>}, {transform_indices = @transform_3, window_bounds = array<i64: 64, 128>}]} {
    %c0 = arith.constant 0 : index
    %c0_0 = arith.constant 0 : index
    %0 = vector.load %arg1[%c0, %c0_0] : memref<64x192xbf16, #tpu.memory_space<vmem>>, vector<64x192xbf16>
    %c0_1 = arith.constant 0 : index
    %c0_2 = arith.constant 0 : index
    %1 = vector.load %arg2[%c0_1, %c0_2] : memref<192x128xbf16, #tpu.memory_space<vmem>>, vector<192x128xbf16>
    %cst = arith.constant dense<0.000000e+00> : vector<64x128xf32>
    %2 = tpu.matmul %0, %1, %cst {dimension_numbers = #tpu.dot_dimension_numbers<[1], [0], [0], [1], [0, 0, 1, 1], [], []>} : vector<64x192xbf16>, vector<192x128xbf16>, vector<64x128xf32> -> vector<64x128xf32>
    %c0_3 = arith.constant 0 : index
    %c0_4 = arith.constant 0 : index
    %3 = vector.load %arg3[%c0_3, %c0_4] : memref<1x128xf32, #tpu.memory_space<vmem>>, vector<1x128xf32>
    %4 = vector.broadcast %3 : vector<1x128xf32> to vector<64x128xf32>
    %5 = arith.addf %2, %4 : vector<64x128xf32>
    %c0_5 = arith.constant 0 : index
    %c0_6 = arith.constant 0 : index
    %6 = vector.load %arg4[%c0_5, %c0_6] : memref<64x128xf32, #tpu.memory_space<vmem>>, vector<64x128xf32>
    tpu.vector_store %arg4[%c0_5, %c0_6], %5 {strides = array<i32>} : memref<64x128xf32, #tpu.memory_space<vmem>>, vector<64x128xf32>,
    return
  }
  func.func @transform_0(%arg0: i32) -> (i32, i32) {
    %c0_i32 = arith.constant 0 : i32
    %c0_i32_0 = arith.constant 0 : i32
    return %arg0, %c0_i32 : i32, i32
  }
  func.func @transform_1(%arg0: i32) -> (i32, i32) {
    %c0_i32 = arith.constant 0 : i32
    %c0_i32_0 = arith.constant 0 : i32
    %c0_i32_1 = arith.constant 0 : i32
    return %c0_i32, %c0_i32_0 : i32, i32
  }
  func.func @transform_2(%arg0: i32) -> (i32, i32) {
    %c0_i32 = arith.constant 0 : i32
    %c0_i32_0 = arith.constant 0 : i32
    %c0_i32_1 = arith.constant 0 : i32
    return %c0_i32, %c0_i32_0 : i32, i32
  }
  func.func @transform_3(%arg0: i32) -> (i32, i32) {
    %c0_i32 = arith.constant 0 : i32
    %c0_i32_0 = arith.constant 0 : i32
    return %arg0, %c0_i32 : i32, i32
  }
}

</mosaic_0001>

<llo_original>
// kernel: tile.8
$region0: #{tile.8}
  #allocation0 [shape = 's32[1]{0}', space=sflag, size = 0x4, scoped, tag = 'scoped memory for tile.8']
  %s0 = inlined_call_operand.vmem [shape: f32[32], index: 0, kind: input, shape index: {}]
  %s1 = inlined_call_operand.vmem [shape: f32[4,32], index: 1, kind: output, shape index: {}]
  // Predicated region
  $region2: #{tile.8} parent=0 // pred_check
    _
  $region3: #{tile.8} parent=0 // pred_check_branch
    %3 = sbr.rel (0) target = $region5
  $region4: #{tile.8} parent=0 // pred_region
    _
  $region5: #{tile.8} parent=0 // pred_fallthru
    _
  %v4 = vld [vmem:[%s0] ss:$0 sm:$0xff]
  %5 = vst [vmem:[%s1] sm:$0xf] %v4

// kernel: tile.9
$region0: #{tile.9}
  %s0 = inlined_call_operand.vmem [shape: f32[4,32], index: 0, kind: input, shape index: {}]
  %s1 = inlined_call_operand.vmem [shape: f32[1,128], index: 1, kind: output, shape index: {}]
  $region1: #{tile.9} parent=0
    #allocation0 [shape = 'u8[4096]{0}', space=vmem, size = 0x1000, scoped, tag = 'scoped mem for output reshape']
    #allocation1 [shape = 'u8[4096]{0}', space=vmem, size = 0x1000, scoped, tag = 'scoped mem for input reshape']
    %s3 = sshll.u32 1, 4
    %s4 = ssub.s32 %s3, 1
    %v5 = vld [vmem:[%s0] sm:%s4]
    %6 = vst [vmem:[#allocation1] sm:%s4] %v5
    %v7 = vld [vmem:[#allocation1] sm:$0x1]
    %vm8 = vcmask 261120
    %9 = vst.msk [vmem:[#allocation0] sm:$0x1] %vm8, %v7
    %s10 = scalar_lea.vmem [#allocation1], 3
    %v11 = vld [vmem:[%s10] sm:$0x1]
    %12 = vrot.lane.b32.xlu0 %v11, 96
    %v13 = vpop.permute.xlu0 %12
    %vm14 = vcmask 1048320
    %15 = vst.msk [vmem:[#allocation0] sm:$0x1] %vm14, %v13
    %s16 = scalar_lea.vmem [#allocation1], 2
    %v17 = vld [vmem:[%s16] sm:$0x1]
    %18 = vrot.lane.b32.xlu0 %v17, 64
    %v19 = vpop.permute.xlu0 %18
    %vm20 = vcmask 785920
    %21 = vst.msk [vmem:[#allocation0] sm:$0x1] %vm20, %v19
    %s22 = scalar_lea.vmem [#allocation1], 1
    %v23 = vld [vmem:[%s22] sm:$0x1]
    %24 = vrot.lane.b32.xlu0 %v23, 32
    %v25 = vpop.permute.xlu0 %24
    %vm26 = vcmask 523520
    %27 = vst.msk [vmem:[#allocation0] sm:$0x1] %vm26, %v25
    %s29 = sshll.u32 1, 1
    %s30 = ssub.s32 %s29, 1
    %v32 = vld [vmem:[#allocation0] sm:%s30]
    %s33 = sshll.u32 1, 1
    %s34 = ssub.s32 %s33, 1
    %35 = vst [vmem:[%s1] sm:%s34] %v32

// kernel: conv_layer_pallas.1
$region0: #{conv_layer_pallas.1}
  #allocation0 [shape = 'u32[]', space=smem, size = 0x4, offset = 0x4, fixed_abs, tag = 'smem constant byte address 0x4 - core index']
  #allocation1 [shape = 'u32[144,128]{1,0:T(1,128)}', space=vmem, size = 0x12000, scoped, tag = 'internal scratch']
  %s0 = inlined_call_operand.vmem [shape: bf16[128,192], index: 0, kind: input, shape index: {}]
  %s1 = inlined_call_operand.vmem [shape: bf16[192,128], index: 1, kind: input, shape index: {}]
  %s2 = inlined_call_operand.vmem [shape: f32[1,128], index: 2, kind: input, shape index: {}]
  %s3 = inlined_call_operand.vmem [shape: f32[128,128], index: 3, kind: output, shape index: {}]
  %s4 = sld [smem:[#allocation0]]
  $region45: #{conv_layer_pallas.1} parent=0
    _
  %s6 = ssub.s32 1, %s4
  %s7 = scalar_select 0, %s6, %s4
  loop: start=0, step=1, limit=4
  $region2: #{conv_layer_pallas.1} parent=0 // loop_pre_header
    _
  $region3: #{conv_layer_pallas.1} parent=0 // loop_header
    %s9 = sphi 0, %s13
    %p10 = scmp.ge.s32.totalorder %s9, 4
    %s19 = sphi 0, %s21
    %s22 = sphi 0, %s19
    %s23 = sphi 0, %s22
    %s39 = sphi 0, %s23
    %s43 = sphi 0, %s43
    %s45 = sphi 0, %s43
    %s46 = sphi 0, %s45
    %s60 = sphi 0, %s46
    %s64 = sphi 0, %s64
    %s66 = sphi 0, %s64
    %s67 = sphi 0, %s66
    %s81 = sphi 0, %s67
    %s87 = sphi 0, %s89
    %s90 = sphi 0, %s87
    %s91 = sphi 0, %s90
    %s107 = sphi 0, %s91
  $region4: #{conv_layer_pallas.1} parent=0 // loop_header_branch
    %12 = sbr.rel (%p10) target = $region8
  $region5: #{conv_layer_pallas.1} parent=0 // loop_body
    %s14 = ssub.s32 %s9, 1
    %s15 = ssub.s32 %s9, 2
    %s16 = sadd.s32 %s9, 1
    %s17 = ssub.s32 %s9, %s16
    %p18 = scmp.eq.s32.totalorder %s17, 0
    %s20 = sadd.s32 %s19, 1
    %s21 = scalar_select %p18, %s19, %s20
    %p24 = pneg %p18
    %p25 = scmp.eq.s32.totalorder %s9, 1
    %p26 = por %p24, %p25
    %p27 = scmp.ne.s32.totalorder %s19, %s22
    %p28 = scmp.eq.s32.totalorder %s9, 0
    %p29 = por %p27, %p28
    %p30 = scmp.ne.s32.totalorder %s19, %s22
    %p31 = scmp.eq.s32.totalorder %s14, 1
    %p32 = por %p30, %p31
    %p33 = scmp.ne.s32.totalorder %s22, %s23
    %p34 = scmp.eq.s32.totalorder %s14, 0
    %p35 = por %p33, %p34
    %p36 = scmp.ne.s32.totalorder %s22, %s23
    %p37 = scmp.eq.s32.totalorder %s15, 1
    %p38 = por %p36, %p37
    %p40 = scmp.ne.s32.totalorder %s23, %s39
    %p41 = scmp.eq.s32.totalorder %s15, 0
    %p42 = por %p40, %p41
    %s44 = sadd.s32 %s43, 1
    %p47 = scmp.eq.s32.totalorder %s9, 1
    %p48 = scmp.ne.s32.totalorder %s43, %s45
    %p49 = scmp.eq.s32.totalorder %s9, 0
    %p50 = por %p48, %p49
    %p51 = scmp.ne.s32.totalorder %s43, %s45
    %p52 = scmp.eq.s32.totalorder %s14, 1
    %p53 = por %p51, %p52
    %p54 = scmp.ne.s32.totalorder %s45, %s46
    %p55 = scmp.eq.s32.totalorder %s14, 0
    %p56 = por %p54, %p55
    %p57 = scmp.ne.s32.totalorder %s45, %s46
    %p58 = scmp.eq.s32.totalorder %s15, 1
    %p59 = por %p57, %p58
    %p61 = scmp.ne.s32.totalorder %s46, %s60
    %p62 = scmp.eq.s32.totalorder %s15, 0
    %p63 = por %p61, %p62
    %s65 = sadd.s32 %s64, 1
    %p68 = scmp.eq.s32.totalorder %s9, 1
    %p69 = scmp.ne.s32.totalorder %s64, %s66
    %p70 = scmp.eq.s32.totalorder %s9, 0
    %p71 = por %p69, %p70
    %p72 = scmp.ne.s32.totalorder %s64, %s66
    %p73 = scmp.eq.s32.totalorder %s14, 1
    %p74 = por %p72, %p73
    %p75 = scmp.ne.s32.totalorder %s66, %s67
    %p76 = scmp.eq.s32.totalorder %s14, 0
    %p77 = por %p75, %p76
    %p78 = scmp.ne.s32.totalorder %s66, %s67
    %p79 = scmp.eq.s32.totalorder %s15, 1
    %p80 = por %p78, %p79
    %p82 = scmp.ne.s32.totalorder %s67, %s81
    %p83 = scmp.eq.s32.totalorder %s15, 0
    %p84 = por %p82, %p83
    %s85 = ssub.s32 %s9, %s16
    %p86 = scmp.eq.s32.totalorder %s85, 0
    %s88 = sadd.s32 %s87, 1
    %s89 = scalar_select %p86, %s87, %s88
    %p92 = pneg %p86
    %p93 = scmp.eq.s32.totalorder %s9, 1
    %p94 = por %p92, %p93
    %p95 = scmp.ne.s32.totalorder %s87, %s90
    %p96 = scmp.eq.s32.totalorder %s9, 0
    %p97 = por %p95, %p96
    %p98 = scmp.ne.s32.totalorder %s87, %s90
    %p99 = scmp.eq.s32.totalorder %s14, 1
    %p100 = por %p98, %p99
    %p101 = scmp.ne.s32.totalorder %s90, %s91
    %p102 = scmp.eq.s32.totalorder %s14, 0
    %p103 = por %p101, %p102
    %p104 = scmp.ne.s32.totalorder %s90, %s91
    %p105 = scmp.eq.s32.totalorder %s15, 1
    %p106 = por %p104, %p105
    %p108 = scmp.ne.s32.totalorder %s91, %s107
    %p109 = scmp.eq.s32.totalorder %s15, 0
    %p110 = por %p108, %p109
    %p111 = scmp.le.s32.totalorder 1, %s9
    %p112 = scmp.lt.s32.totalorder %s9, 3
    %p113 = pnand %p111, %p112
    %p114 = pneg %p113
    // Predicated region
    $region9: #{conv_layer_pallas.1} parent=5 // pred_check
      _
    $region10: #{conv_layer_pallas.1} parent=5 // pred_check_branch
      %116 = sbr.rel (%p113) target = $region12
    $region11: #{conv_layer_pallas.1} parent=5 // pred_region
      %s117 = ssub.s32 %s9, 1
      // Predicated region
      $region13: #{conv_layer_pallas.1} parent=11 // pred_check
        %p118 = pneg %p56
      $region14: #{conv_layer_pallas.1} parent=11 // pred_check_branch
        %120 = sbr.rel (%p118) target = $region16
      $region15: #{conv_layer_pallas.1} parent=11 // pred_region
        _
      $region16: #{conv_layer_pallas.1} parent=11 // pred_fallthru
        _
      // Predicated region
      $region17: #{conv_layer_pallas.1} parent=11 // pred_check
        %p121 = pneg %p77
      $region18: #{conv_layer_pallas.1} parent=11 // pred_check_branch
        %123 = sbr.rel (%p121) target = $region20
      $region19: #{conv_layer_pallas.1} parent=11 // pred_region
        _
      $region20: #{conv_layer_pallas.1} parent=11 // pred_fallthru
        _
    $region12: #{conv_layer_pallas.1} parent=5 // pred_fallthru
      _
    %p124 = scmp.lt.s32.totalorder %s9, 2
    // Predicated region
    $region21: #{conv_layer_pallas.1} parent=5 // pred_check
      %p125 = pneg %p124
    $region22: #{conv_layer_pallas.1} parent=5 // pred_check_branch
      %127 = sbr.rel (%p125) target = $region24
    $region23: #{conv_layer_pallas.1} parent=5 // pred_region
      // Predicated region
      $region25: #{conv_layer_pallas.1} parent=23 // pred_check
        %p128 = pneg %p29
      $region26: #{conv_layer_pallas.1} parent=23 // pred_check_branch
        %130 = sbr.rel (%p128) target = $region28
      $region27: #{conv_layer_pallas.1} parent=23 // pred_region
        %s131 = smul.u32 8, %s9
        %p132 = scmp.lt.s32.totalorder %s131, 15
        %s133 = scalar_select %p132, %s131, 15
        %s134 = smul.addr %s133, 2
        %s135 = smul.addr %s134, 4
        %s136 = scalar_lea.vmem %s0, %s135
        %s137 = smul.u32 8, %s9
      $region28: #{conv_layer_pallas.1} parent=23 // pred_fallthru
        _
    $region24: #{conv_layer_pallas.1} parent=5 // pred_fallthru
      _
    %p138 = scmp.le.s32.totalorder 1, %s9
    %p139 = scmp.lt.s32.totalorder %s9, 3
    %p140 = pnand %p138, %p139
    %p141 = pneg %p140
    // Predicated region
    $region29: #{conv_layer_pallas.1} parent=5 // pred_check
      _
    $region30: #{conv_layer_pallas.1} parent=5 // pred_check_branch
      %143 = sbr.rel (%p140) target = $region32
    $region31: #{conv_layer_pallas.1} parent=5 // pred_region
      %s144 = ssub.s32 %s9, 1
      %s145 = smul.u32 8, %s14
      %p146 = scmp.lt.s32.totalorder %s145, 15
      %s147 = scalar_select %p146, %s145, 15
      %s148 = smul.addr %s147, 2
      %s149 = smul.addr %s148, 4
      %s150 = scalar_lea.vmem %s0, %s149
      %p151 = pneg %p35
      %p152 = pneg %p32
      %p153 = pneg %p56
      %p154 = pneg %p53
      %p155 = pneg %p77
      %p156 = pneg %p74
      %p157 = pneg %p103
      %p158 = pneg %p100
      %s159 = smul.u32 8, %s14
      %p160 = scmp.lt.s32.totalorder %s159, 15
      %s161 = scalar_select %p160, %s159, 15
      %s162 = smul.addr %s161, 8
      %s163 = scalar_lea.vmem %s3, %s162
      %s164 = smul.u32 8, %s14
      %p165 = scmp.lt.s32.totalorder %s164, 15
      %s166 = scalar_select %p165, %s164, 15
      %s167 = smul.addr %s166, 2
      %s168 = smul.addr %s167, 4
      %s169 = scalar_lea.vmem %s0, %s168
      %s170 = smul.u32 8, %s14
      %s171 = smul.u32 8, %s14
      %p172 = scmp.lt.s32.totalorder %s171, 15
      %s173 = scalar_select %p172, %s171, 15
      %s174 = smul.addr %s173, 8
      %s175 = scalar_lea.vmem %s3, %s174
      %s176 = smul.u32 8, %s14
      %v178 = vld [vmem:[%s169] sm:$0xff]
      %v179 = vld [vmem:[%s169 + $0x8] sm:$0xff]
      %v180 = vld [vmem:[%s169 + $0x10] sm:$0xff]
      %v181 = vld [vmem:[%s169 + $0x18] sm:$0xff]
      %v182 = vld [vmem:[%s169 + $0x20] sm:$0xff]
      %v183 = vld [vmem:[%s169 + $0x28] sm:$0xff]
      %v184 = vld [vmem:[%s169 + $0x30] sm:$0xff]
      %v185 = vld [vmem:[%s169 + $0x38] sm:$0xff]
      %v186 = vld [vmem:[%s1] sm:$0xf]
      %v187 = vld [vmem:[%s1 + $0x4] sm:$0xf]
      %v188 = vld [vmem:[%s1 + $0x8] sm:$0xf]
      %v189 = vld [vmem:[%s1 + $0xc] sm:$0xf]
      %v190 = vld [vmem:[%s1 + $0x10] sm:$0xf]
      %v191 = vld [vmem:[%s1 + $0x14] sm:$0xf]
      %v192 = vld [vmem:[%s1 + $0x18] sm:$0xf]
      %v193 = vld [vmem:[%s1 + $0x1c] sm:$0xf]
      %v194 = vld [vmem:[%s1 + $0x20] sm:$0xf]
      %v195 = vld [vmem:[%s1 + $0x24] sm:$0xf]
      %v196 = vld [vmem:[%s1 + $0x28] sm:$0xf]
      %v197 = vld [vmem:[%s1 + $0x2c] sm:$0xf]
      %v198 = vld [vmem:[%s1 + $0x30] sm:$0xf]
      %v199 = vld [vmem:[%s1 + $0x34] sm:$0xf]
      %v200 = vld [vmem:[%s1 + $0x38] sm:$0xf]
      %v201 = vld [vmem:[%s1 + $0x3c] sm:$0xf]
      %v202 = vld [vmem:[%s1 + $0x40] sm:$0xf]
      %v203 = vld [vmem:[%s1 + $0x44] sm:$0xf]
      %v204 = vld [vmem:[%s1 + $0x48] sm:$0xf]
      %v205 = vld [vmem:[%s1 + $0x4c] sm:$0xf]
      %v206 = vld [vmem:[%s1 + $0x50] sm:$0xf]
      %v207 = vld [vmem:[%s1 + $0x54] sm:$0xf]
      %v208 = vld [vmem:[%s1 + $0x58] sm:$0xf]
      %v209 = vld [vmem:[%s1 + $0x5c] sm:$0xf]
      %v210 = vld [vmem:[%s2] sm:$0x1]
      %v212 = vlaneseq
      %v213 = vshrl.u32 %v212, 7
      %v214 = vsub.s32 0, %v213
      %v215 = vrot.slane %v210, %v214
      %v225 = vunpack.c.l.b16 %v178
      %v226 = vunpack.c.h.b16 %v178
      %v227 = vunpack.c.l.b16 %v179
      %v228 = vunpack.c.h.b16 %v179
      %v229 = vunpack.c.l.b16 %v180
      %v230 = vunpack.c.h.b16 %v180
      %v231 = vunpack.c.l.b16 %v181
      %v232 = vunpack.c.h.b16 %v181
      %v233 = vunpack.c.l.b16 %v182
      %v234 = vunpack.c.h.b16 %v182
      %v235 = vunpack.c.l.b16 %v183
      %v236 = vunpack.c.h.b16 %v183
      %v237 = vunpack.c.l.b16 %v184
      %v238 = vunpack.c.h.b16 %v184
      %v239 = vunpack.c.l.b16 %v185
      %v240 = vunpack.c.h.b16 %v185
      %v241 = vpack.c.b16 %v227, %v225
      %v242 = vpack.c.b16 %v228, %v226
      %v243 = vpack.c.b16 %v231, %v229
      %v244 = vpack.c.b16 %v232, %v230
      %v245 = vpack.c.b16 %v235, %v233
      %v246 = vpack.c.b16 %v236, %v234
      %v247 = vpack.c.b16 %v239, %v237
      %v248 = vpack.c.b16 %v240, %v238
      %v277 = vunpack.c.l.b16 %v186
      %v278 = vunpack.c.l.b16 %v187
      %v279 = vunpack.c.l.b16 %v188
      %v280 = vunpack.c.l.b16 %v189
      %v281 = vunpack.c.l.b16 %v190
      %v282 = vunpack.c.l.b16 %v191
      %v283 = vunpack.c.l.b16 %v192
      %v284 = vunpack.c.l.b16 %v193
      %v285 = vunpack.c.l.b16 %v194
      %v286 = vunpack.c.l.b16 %v195
      %v287 = vunpack.c.l.b16 %v196
      %v288 = vunpack.c.l.b16 %v197
      %v289 = vunpack.c.l.b16 %v198
      %v290 = vunpack.c.l.b16 %v199
      %v291 = vunpack.c.l.b16 %v200
      %v292 = vunpack.c.l.b16 %v201
      %v293 = vunpack.c.l.b16 %v202
      %v294 = vunpack.c.l.b16 %v203
      %v295 = vunpack.c.l.b16 %v204
      %v296 = vunpack.c.l.b16 %v205
      %v297 = vunpack.c.l.b16 %v206
      %v298 = vunpack.c.l.b16 %v207
      %v299 = vunpack.c.l.b16 %v208
      %v300 = vunpack.c.l.b16 %v209
      %v301 = vpack.c.b16 %v278, %v277
      %v302 = vpack.c.b16 %v280, %v279
      %v303 = vpack.c.b16 %v282, %v281
      %v304 = vpack.c.b16 %v284, %v283
      %v305 = vpack.c.b16 %v286, %v285
      %v306 = vpack.c.b16 %v288, %v287
      %v307 = vpack.c.b16 %v290, %v289
      %v308 = vpack.c.b16 %v292, %v291
      %v309 = vpack.c.b16 %v294, %v293
      %v310 = vpack.c.b16 %v296, %v295
      %v311 = vpack.c.b16 %v298, %v297
      %v312 = vpack.c.b16 %v300, %v299
      %vm325 = vcmask 523264
      %v327 = vsel %vm325, %v242, 0
      %v330 = vsel %vm325, %v244, 0
      %v333 = vsel %vm325, %v246, 0
      %v336 = vsel %vm325, %v248, 0
      %338 = vmatprep.subr.bf16.mxu0 0
      %339 = vmatpush1.bf16.msra.mxu0 %v308
      %340 = vmatprep.subr.bf16.mxu0 0
      %341 = vmatpush1.bf16.msra.mxu0 %v307
      %342 = vmatprep.subr.bf16.mxu0 0
      %343 = vmatpush1.bf16.msra.mxu0 %v306
      %344 = vmatprep.subr.bf16.mxu0 0
      %345 = vmatpush1.bf16.msra.mxu0 %v305
      %346 = vmatprep.subr.bf16.mxu0 0
      %347 = vmatpush1.bf16.msra.mxu0 %v304
      %348 = vmatprep.subr.bf16.mxu0 0
      %349 = vmatpush1.bf16.msra.mxu0 %v303
      %350 = vmatprep.subr.bf16.mxu0 0
      %351 = vmatpush1.bf16.msra.mxu0 %v302
      %352 = vmatprep.subr.bf16.mxu0 0
      %353 = vmatpush1.bf16.msra.mxu0 %v301
      %354 = vmatprep.subr.bf16.mxu0 0
      %355 = vmatpush2.bf16.msra.mxu0 0
      %356 = vmatprep.subr.bf16.mxu0 0
      %357 = vmatpush2.bf16.msra.mxu0 0
      %358 = vmatprep.subr.bf16.mxu0 0
      %359 = vmatpush2.bf16.msra.mxu0 0
      %360 = vmatprep.subr.bf16.mxu0 0
      %361 = vmatpush2.bf16.msra.mxu0 0
      %362 = vmatprep.subr.bf16.mxu0 0
      %363 = vmatpush2.bf16.msra.mxu0 %v312
      %364 = vmatprep.subr.bf16.mxu0 0
      %365 = vmatpush2.bf16.msra.mxu0 %v311
      %366 = vmatprep.subr.bf16.mxu0 0
      %367 = vmatpush2.bf16.msra.mxu0 %v310
      %368 = vmatprep.subr.bf16.mxu0 0
      %369 = vmatpush2.bf16.msra.mxu0 %v309
      %370 = vmatprep.mubr.bf16.mxu0 %v327
      %371 = vmatmul.mubr.bf16.gmra.mxu0 %v241
      %v372 = vpop.f32.mrf.mxu0
      %v373 = vadd.f32 %v215, %v372
      %v374 = vpop.f32.mrf.mxu0
      %v375 = vpop.f32.mrf.mxu0
      %v376 = vadd.f32 %v215, %v375
      %v377 = vpop.f32.mrf.mxu0
      %378 = vmatprep.mubr.bf16.mxu0 %v330
      %379 = vmatmul.mubr.bf16.gmra.mxu0 %v243
      %v380 = vpop.f32.mrf.mxu0
      %v381 = vadd.f32 %v215, %v380
      %v382 = vpop.f32.mrf.mxu0
      %v383 = vpop.f32.mrf.mxu0
      %v384 = vadd.f32 %v215, %v383
      %v385 = vpop.f32.mrf.mxu0
      %386 = vmatprep.mubr.bf16.mxu0 %v333
      %387 = vmatmul.mubr.bf16.gmra.mxu0 %v245
      %v388 = vpop.f32.mrf.mxu0
      %v389 = vadd.f32 %v215, %v388
      %v390 = vpop.f32.mrf.mxu0
      %v391 = vpop.f32.mrf.mxu0
      %v392 = vadd.f32 %v215, %v391
      %v393 = vpop.f32.mrf.mxu0
      %394 = vmatprep.mubr.bf16.mxu0 %v336
      %395 = vmatmul.mubr.bf16.gmra.mxu0 %v247
      %v396 = vpop.f32.mrf.mxu0
      %v397 = vadd.f32 %v215, %v396
      %v398 = vpop.f32.mrf.mxu0
      %v399 = vpop.f32.mrf.mxu0
      %v400 = vadd.f32 %v215, %v399
      %v401 = vpop.f32.mrf.mxu0
      %402 = vdwg.mxu0
      %403 = vst [vmem:[%s175] sm:$0xff] %v373
      %404 = vst [vmem:[%s175 + $0x8] sm:$0xff] %v376
      %405 = vst [vmem:[%s175 + $0x10] sm:$0xff] %v381
      %406 = vst [vmem:[%s175 + $0x18] sm:$0xff] %v384
      %407 = vst [vmem:[%s175 + $0x20] sm:$0xff] %v389
      %408 = vst [vmem:[%s175 + $0x28] sm:$0xff] %v392
      %409 = vst [vmem:[%s175 + $0x30] sm:$0xff] %v397
      %410 = vst [vmem:[%s175 + $0x38] sm:$0xff] %v400
      %s411 = smul.u32 8, %s14
      %p412 = scmp.lt.s32.totalorder %s411, 15
      %s413 = scalar_select %p412, %s411, 15
      %s414 = smul.addr %s413, 8
      %s415 = scalar_lea.vmem %s3, %s414
      // Predicated region
      $region33: #{conv_layer_pallas.1} parent=31 // pred_check
        %p416 = pneg %p100
      $region34: #{conv_layer_pallas.1} parent=31 // pred_check_branch
        %418 = sbr.rel (%p416) target = $region36
      $region35: #{conv_layer_pallas.1} parent=31 // pred_region
        %s419 = smul.u32 8, %s14
      $region36: #{conv_layer_pallas.1} parent=31 // pred_fallthru
        _
    $region32: #{conv_layer_pallas.1} parent=5 // pred_fallthru
      _
    %p420 = scmp.le.s32.totalorder 2, %s9
    // Predicated region
    $region37: #{conv_layer_pallas.1} parent=5 // pred_check
      %p421 = pneg %p420
    $region38: #{conv_layer_pallas.1} parent=5 // pred_check_branch
      %423 = sbr.rel (%p421) target = $region40
    $region39: #{conv_layer_pallas.1} parent=5 // pred_region
      %s424 = ssub.s32 %s9, 2
      // Predicated region
      $region41: #{conv_layer_pallas.1} parent=39 // pred_check
        %p425 = pneg %p106
      $region42: #{conv_layer_pallas.1} parent=39 // pred_check_branch
        %427 = sbr.rel (%p425) target = $region44
      $region43: #{conv_layer_pallas.1} parent=39 // pred_region
        %s428 = smul.u32 8, %s15
        %p429 = scmp.lt.s32.totalorder %s428, 15
        %s430 = scalar_select %p429, %s428, 15
        %s431 = smul.addr %s430, 8
        %s432 = scalar_lea.vmem %s3, %s431
      $region44: #{conv_layer_pallas.1} parent=39 // pred_fallthru
        _
    $region40: #{conv_layer_pallas.1} parent=5 // pred_fallthru
      _
  $region6: #{conv_layer_pallas.1} parent=0 // loop_footer
    %s13 = sadd.s32 1, %s9
  $region7: #{conv_layer_pallas.1} parent=0 // loop_footer_branch
    %8 = sbr.rel target = $region3
  $region8: #{conv_layer_pallas.1} parent=0 // loop_exit
    _

</llo_original>
